<compile_context>
chip_gen: v7x
topology: tpu7x:2x2x1
jax: 0.10.0
libtpu: 0.0.40
codegen_flags: <defaults>
</compile_context>

<pallas_src>
import jax
import jax.numpy as jnp
from jax.experimental import pallas as pl
from jax.experimental.pallas import tpu as pltpu

_LANE = 128      # vreg lane width
_SUBLANE = 8     # base vreg sublane count (32-bit)


def _posenc_kernel(x_ref, enc_ref, o_ref):
    # x_ref/o_ref: (TB, TC); enc_ref: (1, TC) broadcast over the batch rows.
    # Add in f32 so mixed-dtype inputs (bf16 x + f32 encoding) match torch
    # promotion; for all-f32 inputs the casts are no-ops.
    x = x_ref[...].astype(jnp.float32)
    e = enc_ref[...].astype(jnp.float32)
    o_ref[...] = (x + e).astype(o_ref.dtype)


def _choose_tiles(B, F, itemsize, block_bytes, min_grid_steps):
    """Pick (TB, TC) blocks that are layout-legal and VMEM-budgeted."""
    sublane = max(_SUBLANE, 32 // itemsize)      # 8 f32, 16 bf16, 32 int8/fp8
    row_bytes = F * itemsize
    total_bytes = B * row_bytes
    # Keep at least `min_grid_steps` blocks so DMA/compute overlap and v7x's
    # two TensorCores can both be used; never shrink blocks below ~32 KiB.
    budget = max(min(block_bytes, pl.cdiv(total_bytes, min_grid_steps)),
                 32 * 1024)

    if sublane * row_bytes <= budget:
        # Tile only the batch axis; rows stay whole (lane-dense, TC == F).
        tb = (budget // row_bytes // sublane) * sublane
        return min(B, max(tb, sublane)), F

    tb = min(B, sublane)
    if F % _LANE == 0:
        # Also tile the (lane-dense) flattened feature axis.  Size against the
        # *padded* footprint: the (1, TC) encoding block occupies `sublane`
        # rows in VMEM, so it costs as much as a full x tile.
        divisor = max(tb, sublane) * itemsize
        tc = max(_LANE, (budget // divisor // _LANE) * _LANE)
        return tb, min(tc, F)

    # TODO(synk): S*D huge but not 128-divisible; fall back to full rows
    # (larger VMEM footprint, handled by the derived vmem limit).
    return tb, F


def positional_encoding_forward(x, encoding, *, block_bytes=2 * 1024 * 1024,
                                min_pallas_bytes=256 * 1024, min_grid_steps=4):
    """x: (B, S, D); encoding: (1, max_len, D). Returns x + encoding[:, :S, :]."""
    B, S, D = x.shape
    one, max_len, D2 = encoding.shape
    assert one == 1 and D2 == D, "encoding must be (1, max_len, d_model)"
    assert S <= max_len, "sequence length exceeds max_len"

    out_dtype = jnp.promote_types(x.dtype, encoding.dtype)   # torch-like promotion
    F = S * D
    x_isz = jnp.dtype(x.dtype).itemsize
    o_isz = jnp.dtype(out_dtype).itemsize
    e_isz = jnp.dtype(encoding.dtype).itemsize
    total_bytes = B * F * x_isz

    # Tiny problems: a fused XLA elementwise add beats pallas_call dispatch.
    if total_bytes < min_pallas_bytes:
        return x + encoding[:, :S, :]

    TB, TC = _choose_tiles(B, F, x_isz, block_bytes, min_grid_steps)

    # Encoding view fed to the kernel.  Prefer handing the *whole* parameter to
    # pallas_call and windowing its first S*D elements via the BlockSpec (no
    # XLA slice / extra HBM round trip, and no pre-kernel dtype cast).
    if S == max_len:
        enc2 = encoding.reshape(1, F)
    elif TC % _LANE == 0:
        enc2 = encoding.reshape(1, max_len * D)   # window first S*D elems in-kernel
    else:
        # TODO(synk): lane-sparse window (S*D not a multiple of 128) needs a
        # materialized slice to keep the block shape legal.
        enc2 = jax.lax.slice(encoding, (0, 0, 0), (1, S, D)).reshape(1, F)

    # Batch-block axis innermost: the encoding block index is constant across
    # consecutive grid steps, so its DMA is elided across batch blocks.
    grid = (pl.cdiv(F, TC), pl.cdiv(B, TB))

    # VMEM limit derived from the actual double-buffered, sublane-padded
    # footprint (the (1, TC) enc block pads to `enc_sublane` rows), with 2x
    # headroom, capped at 64 MiB (v7x physical per-TC VMEM).
    enc_sublane = max(_SUBLANE, 32 // e_isz)
    xb = TB * TC * x_isz
    ob = TB * TC * o_isz
    eb = enc_sublane * TC * e_isz
    needed = 2 * (xb + ob + eb)
    vmem_limit = int(min(max(2 * needed, 16 * 1024 * 1024), 64 * 1024 * 1024))

    cost = pl.CostEstimate(
        flops=B * F,
        transcendentals=0,
        bytes_accessed=B * F * (x_isz + o_isz) + F * e_isz,
    )

    out2 = pl.pallas_call(
        _posenc_kernel,
        out_shape=jax.ShapeDtypeStruct((B, F), out_dtype),
        grid_spec=pltpu.PrefetchScalarGridSpec(
            num_scalar_prefetch=0,
            grid=grid,
            in_specs=[
                pl.BlockSpec((TB, TC), lambda c, b: (b, c)),  # x rows
                pl.BlockSpec((1, TC), lambda c, b: (0, c)),   # enc, bcast over B
            ],
            out_specs=pl.BlockSpec((TB, TC), lambda c, b: (b, c)),
        ),
        compiler_params=pltpu.CompilerParams(
            dimension_semantics=("parallel", "parallel"),
            vmem_limit_bytes=vmem_limit,
        ),
        cost_estimate=cost,
    )(x.reshape(B, F), enc2)

    return out2.reshape(B, S, D)


if __name__ == "__main__":
    key = jax.random.PRNGKey(0)
    k_enc, k_x, k_a, k_b = jax.random.split(key, 4)

    # --- Test 1: module demo shape (d_model=32, max_len=8), force Pallas path.
    d_model, max_len, B, S = 32, 8, 2, 8
    encoding = jax.random.normal(k_enc, (1, max_len, d_model), dtype=jnp.float32)
    x = jax.random.normal(k_x, (B, S, d_model), dtype=jnp.float32)
    out = jax.block_until_ready(
        positional_encoding_forward(x, encoding, min_pallas_bytes=0))
    ref = x + encoding[:, :S, :]
    assert out.shape == ref.shape and out.dtype == ref.dtype
    assert jnp.allclose(out, ref, atol=1e-6), "test1 mismatch"

    # --- Test 2: larger shape -> multi-step grid, whole-parameter enc window,
    #     enc DMA elided across the inner batch axis.
    B2, S2, D2, ML2 = 16, 384, 256, 512
    enc_big = jax.random.normal(k_a, (1, ML2, D2), dtype=jnp.float32)
    x_big = jax.random.normal(k_b, (B2, S2, D2), dtype=jnp.float32)
    out2 = jax.block_until_ready(positional_encoding_forward(x_big, enc_big))
    ref2 = x_big + enc_big[:, :S2, :]
    assert jnp.allclose(out2, ref2, atol=1e-6), "test2 mismatch"

    # --- Test 3: S < max_len with F % TC != 0 -> masked partial output blocks
    #     over the windowed whole parameter (locks in the masking behavior).
    B3, S3, D3, ML3 = 4, 96, 128, 160
    enc3 = jax.random.normal(k_a, (1, ML3, D3), dtype=jnp.float32)
    x3 = jax.random.normal(k_b, (B3, S3, D3), dtype=jnp.float32)
    out3 = jax.block_until_ready(
        positional_encoding_forward(x3, enc3, block_bytes=40 * 1024,
                                    min_pallas_bytes=0))
    ref3 = x3 + enc3[:, :S3, :]
    assert jnp.allclose(out3, ref3, atol=1e-6), "test3 mismatch"

    # --- Test 4: mixed dtypes (bf16 x + f32 encoding) -> f32 out, like torch.
    x4 = x.astype(jnp.bfloat16)
    out4 = jax.block_until_ready(
        positional_encoding_forward(x4, encoding, min_pallas_bytes=0))
    ref4 = x4.astype(jnp.float32) + encoding[:, :S, :]
    assert out4.dtype == jnp.float32
    assert jnp.allclose(out4, ref4, atol=1e-2), "test4 mismatch"

    print("KERNEL_OK")
</pallas_src>

<mosaic_0001>
module attributes {stable_mosaic.version = 11 : i64} {
  func.func @_posenc_kernel(%arg0: i32, %arg1: i32, %arg2: memref<2x256xf32, #tpu.memory_space<vmem>>, %arg3: memref<1x256xf32, #tpu.memory_space<vmem>>, %arg4: memref<2x256xf32, #tpu.memory_space<vmem>>) attributes {dimension_semantics = [#tpu.dimension_semantics<parallel>, #tpu.dimension_semantics<parallel>], iteration_bounds = array<i64: 1, 1>, scalar_prefetch = 0 : i64, scratch_operands = 0 : i64, tpu.core_type = #tpu.core_type<tc>, window_params = [{transform_indices = @transform_0, window_bounds = array<i64: 2, 256>}, {transform_indices = @transform_1, window_bounds = array<i64: 1, 256>}, {transform_indices = @transform_2, window_bounds = array<i64: 2, 256>}]} {
    %c0 = arith.constant 0 : index
    %c0_0 = arith.constant 0 : index
    %0 = vector.load %arg2[%c0, %c0_0] : memref<2x256xf32, #tpu.memory_space<vmem>>, vector<2x256xf32>
    %c0_1 = arith.constant 0 : index
    %c0_2 = arith.constant 0 : index
    %1 = vector.load %arg3[%c0_1, %c0_2] : memref<1x256xf32, #tpu.memory_space<vmem>>, vector<1x256xf32>
    %2 = vector.broadcast %1 : vector<1x256xf32> to vector<2x256xf32>
    %3 = arith.addf %0, %2 : vector<2x256xf32>
    %c0_3 = arith.constant 0 : index
    %c0_4 = arith.constant 0 : index
    %4 = vector.load %arg4[%c0_3, %c0_4] : memref<2x256xf32, #tpu.memory_space<vmem>>, vector<2x256xf32>
    tpu.vector_store %arg4[%c0_3, %c0_4], %3 {strides = array<i32>} : memref<2x256xf32, #tpu.memory_space<vmem>>, vector<2x256xf32>,
    return
  }
  func.func @transform_0(%arg0: i32, %arg1: i32) -> (i32, i32) {
    %c0_i32 = arith.constant 0 : i32
    return %arg1, %arg0 : i32, i32
  }
  func.func @transform_1(%arg0: i32, %arg1: i32) -> (i32, i32) {
    %c0_i32 = arith.constant 0 : i32
    %c0_i32_0 = arith.constant 0 : i32
    return %c0_i32, %arg0 : i32, i32
  }
  func.func @transform_2(%arg0: i32, %arg1: i32) -> (i32, i32) {
    %c0_i32 = arith.constant 0 : i32
    return %arg1, %arg0 : i32, i32
  }
}

</mosaic_0001>

<llo_original>
// kernel: tpu_custom_call.1
$region0: #{tpu_custom_call.1}
  #allocation0 [shape = 'u32[]', space=smem, size = 0x4, offset = 0x4, fixed_abs, tag = 'smem constant byte address 0x4 - core index']
  #allocation1 [shape = 'u32[144,128]{1,0:T(1,128)}', space=vmem, size = 0x12000, scoped, tag = 'internal scratch']
  %s0 = inlined_call_operand.hbm [shape: f32[2,256], index: 0, kind: input, shape index: {}]
  %s1 = inlined_call_operand.vmem [shape: f32[1,256], index: 1, kind: input, shape index: {}]
  %s2 = inlined_call_operand.hbm [shape: f32[2,256], index: 2, kind: output, shape index: {}]
  %s3 = sld [smem:[#allocation0]]
  $region22: #{tpu_custom_call.1} parent=0
    _
  %s5 = ssub.s32 1, %s3
  %s6 = scalar_select 0, %s5, %s3
  $region1: #{tpu_custom_call.1} parent=0
    #allocation2 [shape = 'u8[2048]{0}', space=vmem, size = 0x800, scoped, tag = 'input window, operand 0, single buffered']
    #allocation3 [shape = 's32[1]{0}', space=sflag, size = 0x4, scoped, tag = 'scoped memory for tpu_custom_call.1']
    #allocation4 [shape = 's32[1]{0}', space=sflag, size = 0x4, scoped, tag = 'scoped memory for tpu_custom_call.1']
    #allocation5 [shape = 'u8[2048]{0}', space=vmem, size = 0x800, scoped, tag = 'output window, operand 0, single buffered']
    %7 = vsyncpa [#allocation3], 0
    %8 = vsyncpa [#allocation4], 0
    // Predicated region
    $region2: #{tpu_custom_call.1} parent=1 // pred_check
      _
    $region3: #{tpu_custom_call.1} parent=1 // pred_check_branch
      %10 = sbr.rel (0) target = $region5
    $region4: #{tpu_custom_call.1} parent=1 // pred_region
      %s12 = ssub.s32 64, 64
      %13 = vsyncadd [#allocation3], %s12
      %s15 = sshll.u32 [#allocation2], 4
      %s16 = int_to_ptr.vmem [resolvable:$true] %s15
      %18 = dma.hbm_to_vmem [thread:$0]  %s0, 64, %s16, [#allocation3]
    $region5: #{tpu_custom_call.1} parent=1 // pred_fallthru
      _
    // Predicated region
    $region6: #{tpu_custom_call.1} parent=1 // pred_check
      _
    $region7: #{tpu_custom_call.1} parent=1 // pred_check_branch
      %20 = sbr.rel (0) target = $region9
    $region8: #{tpu_custom_call.1} parent=1 // pred_region
      _
    $region9: #{tpu_custom_call.1} parent=1 // pred_fallthru
      _
    // Predicated region
    $region10: #{tpu_custom_call.1} parent=1 // pred_check
      _
    $region11: #{tpu_custom_call.1} parent=1 // pred_check_branch
      %22 = sbr.rel (0) target = $region13
    $region12: #{tpu_custom_call.1} parent=1 // pred_region
      %23 = dma.done [#allocation3], 64
    $region13: #{tpu_custom_call.1} parent=1 // pred_fallthru
      _
    %v24 = vld [vmem:[#allocation2] sm:$0xf]
    %v25 = vld [vmem:[%s1] sm:$0x3]
    %v27 = vlaneseq
    %v28 = vshrl.u32 %v27, 7
    %v29 = vsub.s32 0, %v28
    %v30 = vrot.slane %v25, %v29
    %v31 = vlaneseq
    %v32 = vshrl.u32 %v31, 7
    %v33 = vsub.s32 1, %v32
    %v34 = vrot.slane %v25, %v33
    %v35 = vcombine.low %v30, %v34
    %v37 = vunpack.c.l.s4 1983009808
    %v38 = vunpack.c.0.s8 %v37
    %v39 = vlaneseq
    %v40 = vshrl.u32 %v39, 7
    %v41 = vsub.s32 %v38, %v40
    %v42 = vrot.slane %v35, %v41
    %v44 = vadd.f32 %v24, %v42
    %45 = vst [vmem:[#allocation5] sm:$0xf] %v44
    // Predicated region
    $region14: #{tpu_custom_call.1} parent=1 // pred_check
      _
    $region15: #{tpu_custom_call.1} parent=1 // pred_check_branch
      %47 = sbr.rel (0) target = $region17
    $region16: #{tpu_custom_call.1} parent=1 // pred_region
      %s49 = ssub.s32 64, 64
      %50 = vsyncadd [#allocation4], %s49
      %s52 = sshll.u32 [#allocation5], 4
      %s53 = int_to_ptr.vmem [resolvable:$true] %s52
      %55 = dma.vmem_to_hbm [thread:$0]  %s53, 64, %s2, [#allocation4]
    $region17: #{tpu_custom_call.1} parent=1 // pred_fallthru
      _
    // Predicated region
    $region18: #{tpu_custom_call.1} parent=1 // pred_check
      _
    $region19: #{tpu_custom_call.1} parent=1 // pred_check_branch
      %57 = sbr.rel (0) target = $region21
    $region20: #{tpu_custom_call.1} parent=1 // pred_region
      %58 = dma.done [#allocation4], 64
    $region21: #{tpu_custom_call.1} parent=1 // pred_fallthru
      _
    %59 = vsyncpa [#allocation3], 1
    %60 = vsyncpa [#allocation4], 1

</llo_original>
